<compile_context>
chip_gen: v5e
topology: v5e:2x2
jax: 0.10.0
libtpu: 0.0.40
codegen_flags: <defaults>
</compile_context>

<pallas_src>
import functools
import math

import jax
import jax.numpy as jnp
from jax.experimental import pallas as pl
from jax.experimental.pallas import tpu as pltpu

CLASS_NUM = 225                     # FocalLoss(225)
_MIN_PROB = 1e-4
_NEG_LOG_MIN_PROB = -math.log(_MIN_PROB)
_TB_MAX = 2048                      # batch tile rows (multiple of 128); ~8 MiB pipelined VMEM
_NCORES = 2                         # leading "parallel" axis (both TCs on v7x; no-op on 1-TC chips)


def _cdiv(a, b):
    return (a + b - 1) // b


def _policy_net_loss_kernel(act_pred_ref, act_true_ref, sp_ref, st_ref, out_ref,
                            *, tb, batch, tiles_per_core, inv_batch):
    c = pl.program_id(0)            # parallel (core) axis
    i = pl.program_id(1)            # arbitrary (batch-reduction) axis

    @pl.when(i == 0)
    def _():
        out_ref[...] = jnp.zeros_like(out_ref)

    # Intended (unclamped) tile index -> row offset, used only for masking.
    row0 = (c * tiles_per_core + i) * tb

    logits = act_pred_ref[...].astype(jnp.float32)          # (tb, 225)
    target = act_true_ref[...].astype(jnp.float32)          # (tb, 225)

    # Mask ragged / phantom rows (contents of out-of-bounds block regions are
    # unspecified; zeroed logits keep the row finite, zeroed targets kill it).
    rmask = (row0 + jax.lax.broadcasted_iota(jnp.int32, (tb, 1), 0)) < batch
    logits = jnp.where(rmask, logits, 0.0)
    target = jnp.where(rmask, target, 0.0)

    # ---- Focal loss (gamma=2), log-softmax formulation (tb logs, not tb*225) ----
    m = jnp.max(logits, axis=1, keepdims=True)               # (tb, 1)
    shifted = logits - m
    e = jnp.exp(shifted)                                      # EUP
    denom = jnp.sum(e, axis=1, keepdims=True)                 # (tb, 1)

    # -log(clip(softmax, 1e-4, 1.0)) == min(log(denom) - shifted, -log(1e-4))
    neg_logp = jnp.minimum(jnp.log(denom) - shifted, _NEG_LOG_MIN_PROB)
    prob = jnp.maximum(e * pl.reciprocal(denom, approx=False), _MIN_PROB)
    om = 1.0 - prob                                           # (1-p)^2 as one mul
    focal_sum = jnp.sum((om * om) * neg_logp * target)

    # ---- MSE on the lane-dense (1, tb) state slab ----
    diff = sp_ref[...].astype(jnp.float32) - st_ref[...].astype(jnp.float32)
    cmask = (row0 + jax.lax.broadcasted_iota(jnp.int32, (1, tb), 1)) < batch
    diff = jnp.where(cmask, diff, 0.0)
    mse_sum = jnp.sum(diff * diff)

    # Both torch losses are (sum / B): accumulate sums, scale once per core.
    out_ref[...] += focal_sum + mse_sum                       # broadcast into (8,128) slab

    @pl.when(i == pl.num_programs(1) - 1)
    def _():
        out_ref[...] *= inv_batch


def policy_net_loss(act_pred, act_true, state_pred, state_true, *, tb_max=_TB_MAX):
    """act_pred/act_true: (B, 225); state_pred/state_true: (B, 1) or (B,)."""
    B, C = act_pred.shape
    assert C == CLASS_NUM, f"expected {CLASS_NUM} classes, got {C}"
    assert act_true.shape == (B, C)
    # The combined /B normalization matches torch MSELoss only for one value per row.
    assert state_pred.shape in ((B,), (B, 1)), state_pred.shape
    assert state_true.shape in ((B,), (B, 1)), state_true.shape

    sp = state_pred.reshape(1, B)        # lane-dense slab (metadata-only reshape)
    st = state_true.reshape(1, B)

    if B <= tb_max:
        tb, num_tiles = B, 1             # full-extent blocks: always legal, no masking needed
    else:
        assert tb_max % 128 == 0, "multi-tile path needs a lane-aligned tile"
        tb = tb_max
        num_tiles = _cdiv(B, tb)

    ncores = _NCORES if num_tiles >= 2 else 1
    tiles_per_core = _cdiv(num_tiles, ncores)
    last_tile = num_tiles - 1

    # Clamp so phantom tiles (ncores*tiles_per_core > num_tiles) DMA in-bounds data;
    # the in-kernel row mask (based on the unclamped index) zeroes their contribution.
    def act_map(c, i):
        return (jnp.minimum(c * tiles_per_core + i, last_tile), 0)

    def state_map(c, i):
        return (0, jnp.minimum(c * tiles_per_core + i, last_tile))

    kernel = functools.partial(
        _policy_net_loss_kernel,
        tb=tb, batch=B, tiles_per_core=tiles_per_core, inv_batch=1.0 / B)

    out = pl.pallas_call(
        kernel,
        out_shape=jax.ShapeDtypeStruct((8, 128 * ncores), jnp.float32),
        grid=(ncores, tiles_per_core),
        in_specs=[
            pl.BlockSpec((tb, CLASS_NUM), act_map),
            pl.BlockSpec((tb, CLASS_NUM), act_map),
            pl.BlockSpec((1, tb), state_map),
            pl.BlockSpec((1, tb), state_map),
        ],
        out_specs=pl.BlockSpec((8, 128), lambda c, i: (0, c)),
        compiler_params=pltpu.CompilerParams(
            dimension_semantics=("parallel", "arbitrary")),
    )(act_pred, act_true, sp, st)

    # Every element of a core's (8,128) slab holds that core's (already /B) partial.
    return jnp.sum(out[0, ::128])


def _reference_loss(act_pred, act_true, state_pred, state_true):
    prob = jax.nn.softmax(act_pred.astype(jnp.float32), axis=1)
    prob = jnp.clip(prob, 0.0001, 1.0)
    bl = -jnp.power(1.0 - prob, 2.0) * jnp.log(prob) * act_true
    focal = jnp.mean(jnp.sum(bl, axis=1))
    mse = jnp.mean((state_pred - state_true) ** 2)
    return focal + mse


def _make_inputs(key, batch):
    k1, k2, k3, k4 = jax.random.split(key, 4)
    act_pred = jax.random.normal(k1, (batch, CLASS_NUM), dtype=jnp.float32)
    labels = jax.random.randint(k2, (batch,), 0, CLASS_NUM)
    act_true = jax.nn.one_hot(labels, CLASS_NUM, dtype=jnp.float32)
    state_pred = jax.random.normal(k3, (batch, 1), dtype=jnp.float32)
    state_true = jnp.sign(jax.random.normal(k4, (batch, 1), dtype=jnp.float32))
    return act_pred, act_true, state_pred, state_true


if __name__ == "__main__":
    key = jax.random.PRNGKey(0)
    kA, kB = jax.random.split(key)

    # 1) Small single-tile case (full-extent blocks).
    ap, at, sp, st = _make_inputs(kA, 8)
    loss = jax.block_until_ready(policy_net_loss(ap, at, sp, st))
    ref = jax.block_until_ready(_reference_loss(ap, at, sp, st))
    assert jnp.allclose(loss, ref, rtol=1e-5, atol=1e-5), (loss, ref)

    # 2) Multi-tile case with a small tile (exercises ragged last tile, phantom
    #    tile on the second "core", clamped index_maps, in-kernel row masking).
    ap, at, sp, st = _make_inputs(kB, 300)
    loss2 = jax.block_until_ready(policy_net_loss(ap, at, sp, st, tb_max=128))
    ref2 = jax.block_until_ready(_reference_loss(ap, at, sp, st))
    assert jnp.allclose(loss2, ref2, rtol=1e-5, atol=1e-5), (loss2, ref2)

    print("KERNEL_OK")
</pallas_src>

<mosaic_0001>
module attributes {stable_mosaic.version = 11 : i64} {
  func.func @_policy_net_loss_kernel(%arg0: i32, %arg1: i32, %arg2: memref<8x225xf32, #tpu.memory_space<vmem>>, %arg3: memref<8x225xf32, #tpu.memory_space<vmem>>, %arg4: memref<1x8xf32, #tpu.memory_space<vmem>>, %arg5: memref<1x8xf32, #tpu.memory_space<vmem>>, %arg6: memref<8x128xf32, #tpu.memory_space<vmem>>) attributes {dimension_semantics = [#tpu.dimension_semantics<parallel>, #tpu.dimension_semantics<arbitrary>], iteration_bounds = array<i64: 1, 1>, scalar_prefetch = 0 : i64, scratch_operands = 0 : i64, tpu.core_type = #tpu.core_type<tc>, window_params = [{transform_indices = @transform_0, window_bounds = array<i64: 8, 225>}, {transform_indices = @transform_1, window_bounds = array<i64: 8, 225>}, {transform_indices = @transform_2, window_bounds = array<i64: 1, 8>}, {transform_indices = @transform_3, window_bounds = array<i64: 1, 8>}, {transform_indices = @transform_4, window_bounds = array<i64: 8, 128>}]} {
    %c0_i32 = arith.constant 0 : i32
    %0 = arith.cmpi eq, %arg1, %c0_i32 : i32
    %1 = arith.extui %0 : i1 to i32
    %c0_i32_0 = arith.constant 0 : i32
    %2 = arith.cmpi ne, %1, %c0_i32_0 : i32
    scf.if %2 {
      %cst_25 = arith.constant 0.000000e+00 : f32
      %70 = vector.broadcast %cst_25 : f32 to vector<8x128xf32>
      %c0_26 = arith.constant 0 : index
      %c0_27 = arith.constant 0 : index
      %71 = vector.load %arg6[%c0_26, %c0_27] : memref<8x128xf32, #tpu.memory_space<vmem>>, vector<8x128xf32>
      tpu.vector_store %arg6[%c0_26, %c0_27], %70 {strides = array<i32>} : memref<8x128xf32, #tpu.memory_space<vmem>>, vector<8x128xf32>,
    } else {
    }
    %c1_i32 = arith.constant 1 : i32
    %3 = arith.muli %arg0, %c1_i32 : i32
    %4 = arith.addi %3, %arg1 : i32
    %c8_i32 = arith.constant 8 : i32
    %5 = arith.muli %4, %c8_i32 : i32
    %c0 = arith.constant 0 : index
    %c0_1 = arith.constant 0 : index
    %6 = vector.load %arg2[%c0, %c0_1] : memref<8x225xf32, #tpu.memory_space<vmem>>, vector<8x225xf32>
    %c0_2 = arith.constant 0 : index
    %c0_3 = arith.constant 0 : index
    %7 = vector.load %arg3[%c0_2, %c0_3] : memref<8x225xf32, #tpu.memory_space<vmem>>, vector<8x225xf32>
    %8 = tpu.iota {dimensions = array<i32: 0>} : vector<8x1xi32>
    %9 = vector.broadcast %5 : i32 to vector<8x1xi32>
    %10 = arith.addi %9, %8 : vector<8x1xi32>
    %c8_i32_4 = arith.constant 8 : i32
    %11 = vector.broadcast %c8_i32_4 : i32 to vector<8x1xi32>
    %12 = arith.cmpi slt, %10, %11 : vector<8x1xi32>
    %cst = arith.constant 0.000000e+00 : f32
    %13 = vector.shape_cast %12 : vector<8x1xi1> to vector<8x1xi1>
    %14 = vector.broadcast %13 : vector<8x1xi1> to vector<8x225xi1>
    %15 = vector.broadcast %cst : f32 to vector<8x225xf32>
    %16 = arith.select %14, %6, %15 : vector<8x225xi1>, vector<8x225xf32>
    %cst_5 = arith.constant 0.000000e+00 : f32
    %17 = vector.shape_cast %12 : vector<8x1xi1> to vector<8x1xi1>
    %18 = vector.broadcast %17 : vector<8x1xi1> to vector<8x225xi1>
    %19 = vector.broadcast %cst_5 : f32 to vector<8x225xf32>
    %20 = arith.select %18, %7, %19 : vector<8x225xi1>, vector<8x225xf32>
    %cst_6 = arith.constant dense<0xFF800000> : vector<8xf32>
    %21 = vector.multi_reduction <maximumf>, %16, %cst_6 [1] : vector<8x225xf32> to vector<8xf32>
    %22 = vector.shape_cast %21 : vector<8xf32> to vector<8x1xf32>
    %23 = vector.broadcast %22 : vector<8x1xf32> to vector<8x225xf32>
    %24 = arith.subf %16, %23 : vector<8x225xf32>
    %25 = math.exp %24 : vector<8x225xf32>
    %cst_7 = arith.constant dense<0.000000e+00> : vector<8xf32>
    %26 = vector.multi_reduction <add>, %25, %cst_7 [1] : vector<8x225xf32> to vector<8xf32>
    %27 = vector.shape_cast %26 : vector<8xf32> to vector<8x1xf32>
    %28 = math.log %27 : vector<8x1xf32>
    %29 = vector.broadcast %28 : vector<8x1xf32> to vector<8x225xf32>
    %30 = arith.subf %29, %24 : vector<8x225xf32>
    %cst_8 = arith.constant 9.21034049 : f32
    %31 = vector.broadcast %cst_8 : f32 to vector<8x225xf32>
    %32 = arith.minimumf %30, %31 : vector<8x225xf32>
    %33 = tpu.reciprocal %27 : vector<8x1xf32> -> vector<8x1xf32>
    %34 = vector.broadcast %33 : vector<8x1xf32> to vector<8x225xf32>
    %35 = arith.mulf %25, %34 : vector<8x225xf32>
    %cst_9 = arith.constant 9.99999974E-5 : f32
    %36 = vector.broadcast %cst_9 : f32 to vector<8x225xf32>
    %37 = arith.maximumf %35, %36 : vector<8x225xf32>
    %cst_10 = arith.constant 1.000000e+00 : f32
    %38 = vector.broadcast %cst_10 : f32 to vector<8x225xf32>
    %39 = arith.subf %38, %37 : vector<8x225xf32>
    %40 = arith.mulf %39, %39 : vector<8x225xf32>
    %41 = arith.mulf %40, %32 : vector<8x225xf32>
    %42 = arith.mulf %41, %20 : vector<8x225xf32>
    %43 = vector.shape_cast %42 : vector<8x225xf32> to vector<1x8x225xf32>
    %cst_11 = arith.constant dense<0.000000e+00> : vector<1xf32>
    %44 = vector.multi_reduction <add>, %43, %cst_11 [1, 2] : vector<1x8x225xf32> to vector<1xf32>
    %45 = vector.shape_cast %44 : vector<1xf32> to vector<1x1x1xf32>
    %46 = vector.extract %45[0, 0, 0] : f32 from vector<1x1x1xf32>
    %c0_12 = arith.constant 0 : index
    %c0_13 = arith.constant 0 : index
    %47 = vector.load %arg4[%c0_12, %c0_13] : memref<1x8xf32, #tpu.memory_space<vmem>>, vector<1x8xf32>
    %c0_14 = arith.constant 0 : index
    %c0_15 = arith.constant 0 : index
    %48 = vector.load %arg5[%c0_14, %c0_15] : memref<1x8xf32, #tpu.memory_space<vmem>>, vector<1x8xf32>
    %49 = arith.subf %47, %48 : vector<1x8xf32>
    %50 = tpu.iota {dimensions = array<i32: 1>} : vector<1x8xi32>
    %51 = vector.broadcast %5 : i32 to vector<1x8xi32>
    %52 = arith.addi %51, %50 : vector<1x8xi32>
    %c8_i32_16 = arith.constant 8 : i32
    %53 = vector.broadcast %c8_i32_16 : i32 to vector<1x8xi32>
    %54 = arith.cmpi slt, %52, %53 : vector<1x8xi32>
    %cst_17 = arith.constant 0.000000e+00 : f32
    %55 = vector.broadcast %cst_17 : f32 to vector<1x8xf32>
    %56 = arith.select %54, %49, %55 : vector<1x8xi1>, vector<1x8xf32>
    %57 = arith.mulf %56, %56 : vector<1x8xf32>
    %58 = vector.shape_cast %57 : vector<1x8xf32> to vector<1x1x8xf32>
    %cst_18 = arith.constant dense<0.000000e+00> : vector<1xf32>
    %59 = vector.multi_reduction <add>, %58, %cst_18 [1, 2] : vector<1x1x8xf32> to vector<1xf32>
    %60 = vector.shape_cast %59 : vector<1xf32> to vector<1x1x1xf32>
    %61 = vector.extract %60[0, 0, 0] : f32 from vector<1x1x1xf32>
    %c0_19 = arith.constant 0 : index
    %c0_20 = arith.constant 0 : index
    %62 = vector.load %arg6[%c0_19, %c0_20] : memref<8x128xf32, #tpu.memory_space<vmem>>, vector<8x128xf32>
    %63 = arith.addf %46, %61 : f32
    %64 = vector.broadcast %63 : f32 to vector<8x128xf32>
    %65 = arith.addf %62, %64 : vector<8x128xf32>
    %c0_21 = arith.constant 0 : index
    %c0_22 = arith.constant 0 : index
    %66 = vector.load %arg6[%c0_21, %c0_22] : memref<8x128xf32, #tpu.memory_space<vmem>>, vector<8x128xf32>
    tpu.vector_store %arg6[%c0_21, %c0_22], %65 {strides = array<i32>} : memref<8x128xf32, #tpu.memory_space<vmem>>, vector<8x128xf32>,
    %c0_i32_23 = arith.constant 0 : i32
    %67 = arith.cmpi eq, %arg1, %c0_i32_23 : i32
    %68 = arith.extui %67 : i1 to i32
    %c0_i32_24 = arith.constant 0 : i32
    %69 = arith.cmpi ne, %68, %c0_i32_24 : i32
    scf.if %69 {
      %c0_25 = arith.constant 0 : index
      %c0_26 = arith.constant 0 : index
      %70 = vector.load %arg6[%c0_25, %c0_26] : memref<8x128xf32, #tpu.memory_space<vmem>>, vector<8x128xf32>
      %cst_27 = arith.constant 1.250000e-01 : f32
      %71 = vector.broadcast %cst_27 : f32 to vector<8x128xf32>
      %72 = arith.mulf %70, %71 : vector<8x128xf32>
      %c0_28 = arith.constant 0 : index
      %c0_29 = arith.constant 0 : index
      %73 = vector.load %arg6[%c0_28, %c0_29] : memref<8x128xf32, #tpu.memory_space<vmem>>, vector<8x128xf32>
      tpu.vector_store %arg6[%c0_28, %c0_29], %72 {strides = array<i32>} : memref<8x128xf32, #tpu.memory_space<vmem>>, vector<8x128xf32>,
    } else {
    }
    return
  }
  func.func @transform_0(%arg0: i32, %arg1: i32) -> (i32, i32) {
    %c1_i32 = arith.constant 1 : i32
    %0 = arith.muli %arg0, %c1_i32 : i32
    %1 = arith.addi %0, %arg1 : i32
    %c0_i32 = arith.constant 0 : i32
    %2 = arith.minsi %1, %c0_i32 : i32
    %c0_i32_0 = arith.constant 0 : i32
    %c0_i32_1 = arith.constant 0 : i32
    return %2, %c0_i32_0 : i32, i32
  }
  func.func @transform_1(%arg0: i32, %arg1: i32) -> (i32, i32) {
    %c1_i32 = arith.constant 1 : i32
    %0 = arith.muli %arg0, %c1_i32 : i32
    %1 = arith.addi %0, %arg1 : i32
    %c0_i32 = arith.constant 0 : i32
    %2 = arith.minsi %1, %c0_i32 : i32
    %c0_i32_0 = arith.constant 0 : i32
    %c0_i32_1 = arith.constant 0 : i32
    return %2, %c0_i32_0 : i32, i32
  }
  func.func @transform_2(%arg0: i32, %arg1: i32) -> (i32, i32) {
    %c1_i32 = arith.constant 1 : i32
    %0 = arith.muli %arg0, %c1_i32 : i32
    %1 = arith.addi %0, %arg1 : i32
    %c0_i32 = arith.constant 0 : i32
    %2 = arith.minsi %1, %c0_i32 : i32
    %c0_i32_0 = arith.constant 0 : i32
    %c0_i32_1 = arith.constant 0 : i32
    return %c0_i32_0, %2 : i32, i32
  }
  func.func @transform_3(%arg0: i32, %arg1: i32) -> (i32, i32) {
    %c1_i32 = arith.constant 1 : i32
    %0 = arith.muli %arg0, %c1_i32 : i32
    %1 = arith.addi %0, %arg1 : i32
    %c0_i32 = arith.constant 0 : i32
    %2 = arith.minsi %1, %c0_i32 : i32
    %c0_i32_0 = arith.constant 0 : i32
    %c0_i32_1 = arith.constant 0 : i32
    return %c0_i32_0, %2 : i32, i32
  }
  func.func @transform_4(%arg0: i32, %arg1: i32) -> (i32, i32) {
    %c0_i32 = arith.constant 0 : i32
    %c0_i32_0 = arith.constant 0 : i32
    return %c0_i32, %arg0 : i32, i32
  }
}

</mosaic_0001>

<llo_original>
// kernel: tpu_custom_call.1
$region0: #{tpu_custom_call.1}
  #allocation0 [shape = 'u32[]', space=smem, size = 0x4, offset = 0x4, fixed_abs, tag = 'smem constant byte address 0x4 - core index']
  #allocation1 [shape = 'u32[72,128]{1,0:T(1,128)}', space=vmem, size = 0x9000, scoped, tag = 'internal scratch']
  %s0 = inlined_call_operand.hbm [shape: f32[8,225], index: 0, kind: input, shape index: {}]
  %s1 = inlined_call_operand.hbm [shape: f32[8,225], index: 1, kind: input, shape index: {}]
  %s2 = inlined_call_operand.vmem [shape: f32[1,8], index: 2, kind: input, shape index: {}]
  %s3 = inlined_call_operand.vmem [shape: f32[1,8], index: 3, kind: input, shape index: {}]
  %s4 = inlined_call_operand.hbm [shape: f32[8,128], index: 4, kind: output, shape index: {}]
  %s5 = sld [smem:[#allocation0]]
  $region42: #{tpu_custom_call.1} parent=0
    _
  %s7 = ssub.s32 1, %s5
  %s8 = scalar_select 0, %s7, %s5
  $region1: #{tpu_custom_call.1} parent=0
    #allocation2 [shape = 'u8[8192]{0}', space=vmem, size = 0x2000, scoped, tag = 'input window, operand 0, single buffered']
    #allocation3 [shape = 's32[1]{0}', space=sflag, size = 0x4, scoped, tag = 'scoped memory for tpu_custom_call.1']
    #allocation4 [shape = 's32[1]{0}', space=sflag, size = 0x4, scoped, tag = 'scoped memory for tpu_custom_call.1']
    #allocation5 [shape = 'u8[8192]{0}', space=vmem, size = 0x2000, scoped, tag = 'input window, operand 1, single buffered']
    #allocation6 [shape = 's32[1]{0}', space=sflag, size = 0x4, scoped, tag = 'scoped memory for tpu_custom_call.1']
    #allocation7 [shape = 'u8[4096]{0}', space=vmem, size = 0x1000, scoped, tag = 'output window, operand 0, single buffered']
    %9 = vsyncpa [#allocation3], 0
    %10 = vsyncpa [#allocation6], 0
    %11 = vsyncpa [#allocation4], 0
    // Predicated region
    $region2: #{tpu_custom_call.1} parent=1 // pred_check
      _
    $region3: #{tpu_custom_call.1} parent=1 // pred_check_branch
      %13 = sbr.rel (0) target = $region5
    $region4: #{tpu_custom_call.1} parent=1 // pred_region
      %s14 = sadd.s32 0, 0
      %p15 = scmp.lt.s32.totalorder %s14, 0
      %s16 = scalar_select %p15, %s14, 0
      %18 = vsyncadd [#allocation3], 0
      %s19 = smul.addr %s16, 2
      %s20 = smul.addr %s19, 8
      %s21 = scalar_lea.hbm %s0, %s20
      %s23 = sshll.u32 %s21, 4
      %s24 = int_to_ptr.hbm [resolvable:$true] %s23
      %s25 = sshll.u32 [#allocation2], 4
      %s26 = int_to_ptr.vmem [resolvable:$true] %s25
      %28 = dma.hbm_to_vmem [thread:$0]  %s24, 256, %s26, [#allocation3]
    $region5: #{tpu_custom_call.1} parent=1 // pred_fallthru
      _
    // Predicated region
    $region6: #{tpu_custom_call.1} parent=1 // pred_check
      _
    $region7: #{tpu_custom_call.1} parent=1 // pred_check_branch
      %30 = sbr.rel (0) target = $region9
    $region8: #{tpu_custom_call.1} parent=1 // pred_region
      %s31 = sadd.s32 0, 0
      %p32 = scmp.lt.s32.totalorder %s31, 0
      %s33 = scalar_select %p32, %s31, 0
      %35 = vsyncadd [#allocation6], 0
      %s36 = smul.addr %s33, 2
      %s37 = smul.addr %s36, 8
      %s38 = scalar_lea.hbm %s1, %s37
      %s40 = sshll.u32 %s38, 4
      %s41 = int_to_ptr.hbm [resolvable:$true] %s40
      %s42 = sshll.u32 [#allocation5], 4
      %s43 = int_to_ptr.vmem [resolvable:$true] %s42
      %45 = dma.hbm_to_vmem [thread:$0]  %s41, 256, %s43, [#allocation6]
    $region9: #{tpu_custom_call.1} parent=1 // pred_fallthru
      _
    // Predicated region
    $region10: #{tpu_custom_call.1} parent=1 // pred_check
      _
    $region11: #{tpu_custom_call.1} parent=1 // pred_check_branch
      %47 = sbr.rel (0) target = $region13
    $region12: #{tpu_custom_call.1} parent=1 // pred_region
      %s48 = sadd.s32 0, 0
      %p49 = scmp.lt.s32.totalorder %s48, 0
      %s50 = scalar_select %p49, %s48, 0
      %p51 = scmp.lt.s32.totalorder %s50, 0
      %s52 = scalar_select %p51, %s50, 0
      %s53 = scalar_lea.vmem %s2, %s52
      %s54 = sadd.s32 0, 0
      %p55 = scmp.lt.s32.totalorder %s54, 0
      %s56 = scalar_select %p55, %s54, 0
    $region13: #{tpu_custom_call.1} parent=1 // pred_fallthru
      _
    // Predicated region
    $region14: #{tpu_custom_call.1} parent=1 // pred_check
      _
    $region15: #{tpu_custom_call.1} parent=1 // pred_check_branch
      %58 = sbr.rel (0) target = $region17
    $region16: #{tpu_custom_call.1} parent=1 // pred_region
      %s59 = sadd.s32 0, 0
      %p60 = scmp.lt.s32.totalorder %s59, 0
      %s61 = scalar_select %p60, %s59, 0
      %p62 = scmp.lt.s32.totalorder %s61, 0
      %s63 = scalar_select %p62, %s61, 0
      %s64 = scalar_lea.vmem %s3, %s63
      %s65 = sadd.s32 0, 0
      %p66 = scmp.lt.s32.totalorder %s65, 0
      %s67 = scalar_select %p66, %s65, 0
    $region17: #{tpu_custom_call.1} parent=1 // pred_fallthru
      _
    // Predicated region
    $region18: #{tpu_custom_call.1} parent=1 // pred_check
      _
    $region19: #{tpu_custom_call.1} parent=1 // pred_check_branch
      %69 = sbr.rel (0) target = $region21
    $region20: #{tpu_custom_call.1} parent=1 // pred_region
      %71 = dma.done [#allocation3], 256
    $region21: #{tpu_custom_call.1} parent=1 // pred_fallthru
      _
    // Predicated region
    $region22: #{tpu_custom_call.1} parent=1 // pred_check
      _
    $region23: #{tpu_custom_call.1} parent=1 // pred_check_branch
      %73 = sbr.rel (0) target = $region25
    $region24: #{tpu_custom_call.1} parent=1 // pred_region
      %75 = dma.done [#allocation6], 256
    $region25: #{tpu_custom_call.1} parent=1 // pred_fallthru
      _
    %s76 = sadd.s32 0, 0
    %p77 = scmp.lt.s32.totalorder %s76, 0
    %s78 = scalar_select %p77, %s76, 0
    %p79 = scmp.lt.s32.totalorder %s78, 0
    %s80 = scalar_select %p79, %s78, 0
    %s81 = scalar_lea.vmem %s2, %s80
    %s82 = sadd.s32 0, 0
    %p83 = scmp.lt.s32.totalorder %s82, 0
    %s84 = scalar_select %p83, %s82, 0
    %p85 = scmp.lt.s32.totalorder %s84, 0
    %s86 = scalar_select %p85, %s84, 0
    %s87 = scalar_lea.vmem %s3, %s86
    %s88 = sadd.s32 0, 0
    %p89 = scmp.lt.s32.totalorder %s88, 0
    %s90 = scalar_select %p89, %s88, 0
    %s91 = sadd.s32 0, 0
    %p92 = scmp.lt.s32.totalorder %s91, 0
    %s93 = scalar_select %p92, %s91, 0
    %s94 = sadd.s32 0, 0
    %p95 = scmp.lt.s32.totalorder %s94, 0
    %s96 = scalar_select %p95, %s94, 0
    %p97 = scmp.lt.s32.totalorder %s96, 0
    %s98 = scalar_select %p97, %s96, 0
    %s99 = scalar_lea.vmem %s2, %s98
    %s100 = sadd.s32 0, 0
    %p101 = scmp.lt.s32.totalorder %s100, 0
    %s102 = scalar_select %p101, %s100, 0
    %s103 = sadd.s32 0, 0
    %p104 = scmp.lt.s32.totalorder %s103, 0
    %s105 = scalar_select %p104, %s103, 0
    %p106 = scmp.lt.s32.totalorder %s105, 0
    %s107 = scalar_select %p106, %s105, 0
    %s108 = scalar_lea.vmem %s3, %s107
    %s109 = sadd.s32 0, 0
    %p110 = scmp.lt.s32.totalorder %s109, 0
    %s111 = scalar_select %p110, %s109, 0
    %p112 = scmp.eq.s32.totalorder 0, 0
    // Predicated region
    $region26: #{tpu_custom_call.1} parent=1 // pred_check
      %p113 = pneg %p112
    $region27: #{tpu_custom_call.1} parent=1 // pred_check_branch
      %115 = sbr.rel (%p113) target = $region29
    $region28: #{tpu_custom_call.1} parent=1 // pred_region
      %116 = vst [vmem:[#allocation7] sm:$0xff] 0.0
    $region29: #{tpu_custom_call.1} parent=1 // pred_fallthru
      _
    %s117 = sadd.s32 0, 0
    %s118 = smul.u32 %s117, 8
    %v119 = vld [vmem:[#allocation2] sm:$0xff]
    %v120 = vld [vmem:[#allocation2 + $0x8] sm:$0xff]
    %v121 = vld [vmem:[#allocation5] sm:$0xff]
    %v122 = vld [vmem:[#allocation5 + $0x8] sm:$0xff]
    %v123 = vlaneseq
    %v124 = vshrl.u32 %v123, 7
    %v125 = vstv %s118
    %v126 = vadd.s32 %v125, %v124
    %vm127 = vcmp.lt.s32.totalorder %v126, 8
    %v128 = vsel %vm127, 1, 0
    %vm129 = vcmp.eq.s32.totalorder %v128, 1
    %v130 = vsel %vm129, %v119, 0.0
    %v131 = vsel %vm129, %v120, 0.0
    %v132 = vsel %vm129, %v121, 0.0
    %v133 = vsel %vm129, %v122, 0.0
    %vm134 = vcmask 793600
    %v135 = vsel %vm134, %v131, -inf
    %v136 = vmax.f32 %v130, %v135
    %137 = vmax.xlane.f32.xlu0 %v136
    %v138 = vpop.xlane.xlu0 %137
    %v139 = vsub.f32 %v130, %v138
    %v140 = vsub.f32 %v131, %v138
    %v141 = vmul.f32 %v139, 1.442695
    %v142 = vpow.pop %v141
    %v143 = vmul.f32 %v140, 1.442695
    %v144 = vpow.pop %v143
    %v145 = vsel %vm134, %v144, 0.0
    %v146 = vadd.f32 %v142, %v145
    %147 = vadd.xlane.f32.xlu0 %v146
    %v148 = vpop.xlane.xlu0 %147
    %v149 = vlog2.pop %v148
    %v150 = vmul.f32 %v149, 0.6931472
    %v151 = vsub.f32 %v150, %v139
    %v152 = vsub.f32 %v150, %v140
    %v153 = vmin.f32 %v151, 9.2103405
    %v154 = vmin.f32 %v152, 9.2103405
    %v155 = vrcp.pop %v148
    %v156 = vmul.f32 %v148, %v155
    %v157 = vsub.f32 1.0, %v156
    %v158 = vmul.f32 %v155, %v157
    %v159 = vadd.f32 %v155, %v158
    %vm160 = vweird.f32 %v148
    %vm161 = vweird.f32 %v155
    %vm162 = vmor %vm160, %vm161
    %v163 = vsel %vm162, %v155, %v159
    %v164 = vand.u32 2147483647, %v148
    %vm165 = vcmp.eq.f32.partialorder %v164, 8.507059e+37
    %v166 = vand.u32 %v148, 2147483648
    %v167 = vor.u32 1.1754944e-38, %v166
    %v168 = vsel %vm165, %v167, %v163
    %v169 = vmul.f32 %v142, %v168
    %v170 = vmul.f32 %v144, %v168
    %v171 = vmax.f32 %v169, 0.0001
    %v172 = vmax.f32 %v170, 0.0001
    %v173 = vsub.f32 1.0, %v171
    %v174 = vsub.f32 1.0, %v172
    %v175 = vmul.f32 %v173, %v173
    %v176 = vmul.f32 %v174, %v174
    %v177 = vmul.f32 %v175, %v153
    %v178 = vmul.f32 %v176, %v154
    %v179 = vmul.f32 %v177, %v132
    %v180 = vmul.f32 %v178, %v133
    %v181 = vsel %vm134, %v180, 0.0
    %v182 = vadd.f32 %v179, %v181
    %183 = vadd.xlane.f32.xlu0 %v182
    %v184 = vpop.xlane.xlu0 %183
    %v185 = vrot.slane %v184, 4
    %v186 = vadd.f32 %v184, %v185
    %v187 = vrot.slane %v186, 2
    %v188 = vadd.f32 %v186, %v187
    %v189 = vrot.slane %v188, 1
    %v190 = vadd.f32 %v188, %v189
    %s191 = vtos %v190
    %v192 = vld [vmem:[%s99] sm:$0x1]
    %v193 = vld [vmem:[%s108] sm:$0x1]
    %v194 = vsub.f32 %v192, %v193
    %v195 = vlaneseq
    %v196 = vand.u32 %v195, 127
    %v197 = vadd.s32 %v125, %v196
    %vm198 = vcmp.lt.s32.totalorder %v197, 8
    %v199 = vsel %vm198, %v194, 0.0
    %v200 = vmul.f32 %v199, %v199
    %vm201 = vcmask 57344
    %v202 = vsel %vm201, %v200, 0.0
    %203 = vadd.xlane.f32.xlu0 %v202
    %v204 = vpop.xlane.xlu0 %203
    %v205 = vrot.slane %v204, 4
    %v206 = vadd.f32 %v204, %v205
    %v207 = vrot.slane %v206, 2
    %v208 = vadd.f32 %v206, %v207
    %v209 = vrot.slane %v208, 1
    %v210 = vadd.f32 %v208, %v209
    %s211 = vtos %v210
    %v212 = vld [vmem:[#allocation7] sm:$0xff]
    %s213 = sadd.f32 %s191, %s211
    %v214 = vstv %s213
    %v215 = vadd.f32 %v212, %v214
    %216 = vst [vmem:[#allocation7] sm:$0xff] %v215
    // Predicated region
    $region30: #{tpu_custom_call.1} parent=1 // pred_check
      %p217 = pneg %p112
    $region31: #{tpu_custom_call.1} parent=1 // pred_check_branch
      %219 = sbr.rel (%p217) target = $region33
    $region32: #{tpu_custom_call.1} parent=1 // pred_region
      %v220 = vld [vmem:[#allocation7] sm:$0xff]
      %v221 = vmul.f32 %v220, 0.125
      %222 = vst [vmem:[#allocation7] sm:$0xff] %v221
    $region33: #{tpu_custom_call.1} parent=1 // pred_fallthru
      _
    // Predicated region
    $region34: #{tpu_custom_call.1} parent=1 // pred_check
      _
    $region35: #{tpu_custom_call.1} parent=1 // pred_check_branch
      %224 = sbr.rel (0) target = $region37
    $region36: #{tpu_custom_call.1} parent=1 // pred_region
      %226 = vsyncadd [#allocation4], 0
      %s228 = sshll.u32 [#allocation7], 4
      %s229 = int_to_ptr.vmem [resolvable:$true] %s228
      %s230 = sshll.u32 %s4, 4
      %s231 = int_to_ptr.hbm [resolvable:$true] %s230
      %233 = dma.vmem_to_hbm [thread:$0]  %s229, 128, %s231, [#allocation4]
    $region37: #{tpu_custom_call.1} parent=1 // pred_fallthru
      _
    // Predicated region
    $region38: #{tpu_custom_call.1} parent=1 // pred_check
      _
    $region39: #{tpu_custom_call.1} parent=1 // pred_check_branch
      %235 = sbr.rel (0) target = $region41
    $region40: #{tpu_custom_call.1} parent=1 // pred_region
      %237 = dma.done [#allocation4], 128
    $region41: #{tpu_custom_call.1} parent=1 // pred_fallthru
      _
    %238 = vsyncpa [#allocation3], 1
    %239 = vsyncpa [#allocation6], 1
    %240 = vsyncpa [#allocation4], 1

</llo_original>
